<compile_context>
chip_gen: v5e
topology: v5e:2x2
jax: 0.10.0
libtpu: 0.0.40
codegen_flags: <defaults>
</compile_context>

<pallas_src>
import functools

import jax
import jax.numpy as jnp
from jax.experimental import pallas as pl
from jax.experimental.pallas import tpu as pltpu

_COLS = 128                       # lane width; keeps every block on the (8,128) grid
_SUBLANES = 8
_VMEM_BUDGET = 4 * 1024 * 1024    # bytes: 2 inputs x 2 pipeline buffers + f32 temps
_MIN_TILE_ROWS = 1024             # below this, per-step fixed cost (~0.35us) dominates


def _pairwise_loss_kernel(x1_ref, x2_ref, part_ref, *, margin, n):
    """One grid step: hinge over a (tile_rows, 128) slab -> (8, 128) partial sum."""
    i = pl.program_id(0)
    # Cast after the load (v5e has no bf16 VALU; accumulate in f32 everywhere).
    x1 = x1_ref[...].astype(jnp.float32)
    x2 = x2_ref[...].astype(jnp.float32)
    hinge = jnp.maximum(x2 - x1 + jnp.float32(margin), 0.0)
    r, c = hinge.shape
    # Validity mask from the global (flattened) element index.  Handles both
    # the sub-(8,128) tail pad of the input and the overhang of a final grid
    # block that doesn't divide the slab.  A couple of VPU ops per vreg; the
    # VALU has huge slack in this memory-bound kernel.
    row = jax.lax.broadcasted_iota(jnp.int32, (r, c), 0)
    col = jax.lax.broadcasted_iota(jnp.int32, (r, c), 1)
    gidx = (i * r + row) * c + col
    hinge = jnp.where(gidx < n, hinge, 0.0)
    # Fold sublane groups together: (r//8, 8, 128) -> sum over axis 0.
    # Layout-preserving (each (8,128) group is one vreg tile); lowers to plain
    # VPU adds.  The expensive cross-lane reduce is done once, outside.
    part_ref[...] = jnp.sum(hinge.reshape(r // _SUBLANES, _SUBLANES, c), axis=0)


def _choose_tile_rows(rows8, itemsize):
    """Row tile (multiple of 8) sized for VMEM and for multi-step grids.

    Budget counts the double-buffered input DMA buffers *and* the in-kernel
    f32 upcast temporaries (matters for bf16/f16 inputs).
    """
    bytes_per_row = 2 * 2 * _COLS * itemsize + 2 * _COLS * 4
    max_rows = max(_SUBLANES, ((_VMEM_BUDGET // bytes_per_row) // _SUBLANES) * _SUBLANES)
    # Aim for >= ~8 grid steps on large inputs (v7x megacore sharding + DMA /
    # compute overlap) while keeping a single big step for small inputs.
    target = max(_MIN_TILE_ROWS,
                 ((pl.cdiv(rows8, 8) + _SUBLANES - 1) // _SUBLANES) * _SUBLANES)
    return min(max_rows, target, rows8)


def pairwise_loss(x1, x2, margin=0.0):
    """Pallas implementation of PairWiseLoss.forward (returns a scalar f32)."""
    assert x1.shape == x2.shape, "x1 and x2 must have the same shape"
    n = x1.size
    dtype = x1.dtype
    itemsize = jnp.dtype(dtype).itemsize

    # Flatten to a lane-dense (rows8, 128) slab; rows8 is a multiple of 8 so
    # only the final sub-(8,128) slab is ever padded (<= 1023 zeros).  For
    # 1024-aligned n there is no pad and no copy at all.  Padded values are
    # masked to 0 inside the kernel, so the fill value never matters.
    slab = _SUBLANES * _COLS
    padded_n = pl.cdiv(n, slab) * slab
    rows8 = padded_n // _COLS
    tile_rows = _choose_tile_rows(rows8, itemsize)
    num_tiles = pl.cdiv(rows8, tile_rows)

    x1f = jnp.ravel(x1)
    x2f = jnp.ravel(x2)
    pad = padded_n - n
    if pad:
        x1f = jnp.pad(x1f, (0, pad))
        x2f = jnp.pad(x2f, (0, pad))
    x1s = x1f.reshape(rows8, _COLS)
    x2s = x2f.reshape(rows8, _COLS)

    partials = pl.pallas_call(
        functools.partial(_pairwise_loss_kernel, margin=float(margin), n=n),
        out_shape=jax.ShapeDtypeStruct((num_tiles * _SUBLANES, _COLS), jnp.float32),
        grid_spec=pltpu.PrefetchScalarGridSpec(
            num_scalar_prefetch=0,
            grid=(num_tiles,),
            in_specs=[
                pl.BlockSpec((tile_rows, _COLS), lambda i: (i, 0)),
                pl.BlockSpec((tile_rows, _COLS), lambda i: (i, 0)),
            ],
            # Each grid step owns its own lane-dense output block -> no revisit,
            # no serial dependency, grid axis shards across both TCs on v7x.
            out_specs=pl.BlockSpec((_SUBLANES, _COLS), lambda i: (i, 0)),
        ),
        compiler_params=pltpu.CompilerParams(
            dimension_semantics=("parallel",),
        ),
    )(x1s, x2s)

    # Final tiny cross-lane reduce + 'mean' normalization in XLA.
    return (jnp.sum(partials) / jnp.float32(n)).astype(jnp.float32)


def pairwise_loss_ref(x1, x2, margin=0.0):
    x1 = x1.astype(jnp.float32)
    x2 = x2.astype(jnp.float32)
    return jnp.mean(jnp.maximum(x2 - x1 + jnp.float32(margin), 0.0))


if __name__ == "__main__":
    key = jax.random.PRNGKey(0)
    k1, k2, k3, k4, k5, k6 = jax.random.split(key, 6)

    # Case 1: exact lane-dense fit, f32.
    B, D = 16, 128
    a1 = jax.random.normal(k1, (B, D), dtype=jnp.float32)
    a2 = jax.random.normal(k2, (B, D), dtype=jnp.float32)
    out1 = pairwise_loss(a1, a2, margin=0.0)
    jax.block_until_ready(out1)
    assert jnp.allclose(out1, pairwise_loss_ref(a1, a2, 0.0), rtol=1e-5, atol=1e-6), out1

    # Case 2: ragged shape (tail masked in-kernel) with nonzero margin, f32.
    b1 = jax.random.normal(k3, (5, 33), dtype=jnp.float32)
    b2 = jax.random.normal(k4, (5, 33), dtype=jnp.float32)
    out2 = pairwise_loss(b1, b2, margin=0.25)
    jax.block_until_ready(out2)
    assert jnp.allclose(out2, pairwise_loss_ref(b1, b2, 0.25), rtol=1e-5, atol=1e-6), out2

    # Case 3: bf16 inputs read directly (no wrapper upcast).
    c1 = a1.astype(jnp.bfloat16)
    c2 = a2.astype(jnp.bfloat16)
    out3 = pairwise_loss(c1, c2, margin=0.0)
    jax.block_until_ready(out3)
    assert jnp.allclose(out3, pairwise_loss_ref(c1, c2, 0.0), rtol=2e-2, atol=2e-3), out3

    # Case 4: ragged multi-row slab (exercises overhanging last block + mask).
    d1 = jax.random.normal(k5, (7, 300), dtype=jnp.float32)
    d2 = jax.random.normal(k6, (7, 300), dtype=jnp.float32)
    out4 = pairwise_loss(d1, d2, margin=0.1)
    jax.block_until_ready(out4)
    assert jnp.allclose(out4, pairwise_loss_ref(d1, d2, 0.1), rtol=1e-5, atol=1e-6), out4

    print("KERNEL_OK")
</pallas_src>

<mosaic_0001>
module attributes {stable_mosaic.version = 11 : i64} {
  func.func @_pairwise_loss_kernel(%arg0: i32, %arg1: memref<16x128xf32, #tpu.memory_space<vmem>>, %arg2: memref<16x128xf32, #tpu.memory_space<vmem>>, %arg3: memref<8x128xf32, #tpu.memory_space<vmem>>) attributes {dimension_semantics = [#tpu.dimension_semantics<parallel>], iteration_bounds = array<i64: 1>, scalar_prefetch = 0 : i64, scratch_operands = 0 : i64, tpu.core_type = #tpu.core_type<tc>, window_params = [{transform_indices = @transform_0, window_bounds = array<i64: 16, 128>}, {transform_indices = @transform_1, window_bounds = array<i64: 16, 128>}, {transform_indices = @transform_2, window_bounds = array<i64: 8, 128>}]} {
    %c0 = arith.constant 0 : index
    %c0_0 = arith.constant 0 : index
    %0 = vector.load %arg1[%c0, %c0_0] : memref<16x128xf32, #tpu.memory_space<vmem>>, vector<16x128xf32>
    %c0_1 = arith.constant 0 : index
    %c0_2 = arith.constant 0 : index
    %1 = vector.load %arg2[%c0_1, %c0_2] : memref<16x128xf32, #tpu.memory_space<vmem>>, vector<16x128xf32>
    %2 = arith.subf %1, %0 : vector<16x128xf32>
    %cst = arith.constant 0.000000e+00 : f32
    %3 = vector.broadcast %cst : f32 to vector<16x128xf32>
    %4 = arith.addf %2, %3 : vector<16x128xf32>
    %cst_3 = arith.constant 0.000000e+00 : f32
    %5 = vector.broadcast %cst_3 : f32 to vector<16x128xf32>
    %6 = arith.maximumf %4, %5 : vector<16x128xf32>
    %7 = tpu.iota {dimensions = array<i32: 0>} : vector<16x128xi32>
    %8 = tpu.iota {dimensions = array<i32: 1>} : vector<16x128xi32>
    %c16_i32 = arith.constant 16 : i32
    %9 = arith.muli %arg0, %c16_i32 : i32
    %10 = vector.broadcast %9 : i32 to vector<16x128xi32>
    %11 = arith.addi %10, %7 : vector<16x128xi32>
    %c128_i32 = arith.constant 128 : i32
    %12 = vector.broadcast %c128_i32 : i32 to vector<16x128xi32>
    %13 = arith.muli %11, %12 : vector<16x128xi32>
    %14 = arith.addi %13, %8 : vector<16x128xi32>
    %c2048_i32 = arith.constant 2048 : i32
    %15 = vector.broadcast %c2048_i32 : i32 to vector<16x128xi32>
    %16 = arith.cmpi slt, %14, %15 : vector<16x128xi32>
    %cst_4 = arith.constant 0.000000e+00 : f32
    %17 = vector.broadcast %cst_4 : f32 to vector<16x128xf32>
    %18 = arith.select %16, %6, %17 : vector<16x128xi1>, vector<16x128xf32>
    %19 = vector.shape_cast %18 : vector<16x128xf32> to vector<2x8x128xf32>
    %cst_5 = arith.constant dense<0.000000e+00> : vector<8x128xf32>
    %20 = vector.multi_reduction <add>, %19, %cst_5 [0] : vector<2x8x128xf32> to vector<8x128xf32>
    %c0_6 = arith.constant 0 : index
    %c0_7 = arith.constant 0 : index
    %21 = vector.load %arg3[%c0_6, %c0_7] : memref<8x128xf32, #tpu.memory_space<vmem>>, vector<8x128xf32>
    tpu.vector_store %arg3[%c0_6, %c0_7], %20 {strides = array<i32>} : memref<8x128xf32, #tpu.memory_space<vmem>>, vector<8x128xf32>,
    return
  }
  func.func @transform_0(%arg0: i32) -> (i32, i32) {
    %c0_i32 = arith.constant 0 : i32
    %c0_i32_0 = arith.constant 0 : i32
    return %arg0, %c0_i32 : i32, i32
  }
  func.func @transform_1(%arg0: i32) -> (i32, i32) {
    %c0_i32 = arith.constant 0 : i32
    %c0_i32_0 = arith.constant 0 : i32
    return %arg0, %c0_i32 : i32, i32
  }
  func.func @transform_2(%arg0: i32) -> (i32, i32) {
    %c0_i32 = arith.constant 0 : i32
    %c0_i32_0 = arith.constant 0 : i32
    return %arg0, %c0_i32 : i32, i32
  }
}

</mosaic_0001>

<llo_original>
// kernel: tpu_custom_call.1
$region0: #{tpu_custom_call.1}
  #allocation0 [shape = 'u32[]', space=smem, size = 0x4, offset = 0x4, fixed_abs, tag = 'smem constant byte address 0x4 - core index']
  #allocation1 [shape = 'u32[72,128]{1,0:T(1,128)}', space=vmem, size = 0x9000, scoped, tag = 'internal scratch']
  %s0 = inlined_call_operand.hbm [shape: f32[16,128], index: 0, kind: input, shape index: {}]
  %s1 = inlined_call_operand.hbm [shape: f32[16,128], index: 1, kind: input, shape index: {}]
  %s2 = inlined_call_operand.hbm [shape: f32[8,128], index: 2, kind: output, shape index: {}]
  %s3 = sld [smem:[#allocation0]]
  $region26: #{tpu_custom_call.1} parent=0
    _
  %s5 = ssub.s32 1, %s3
  %s6 = scalar_select 0, %s5, %s3
  $region1: #{tpu_custom_call.1} parent=0
    #allocation2 [shape = 'u8[8192]{0}', space=vmem, size = 0x2000, scoped, tag = 'input window, operand 0, single buffered']
    #allocation3 [shape = 's32[1]{0}', space=sflag, size = 0x4, scoped, tag = 'scoped memory for tpu_custom_call.1']
    #allocation4 [shape = 's32[1]{0}', space=sflag, size = 0x4, scoped, tag = 'scoped memory for tpu_custom_call.1']
    #allocation5 [shape = 'u8[8192]{0}', space=vmem, size = 0x2000, scoped, tag = 'input window, operand 1, single buffered']
    #allocation6 [shape = 's32[1]{0}', space=sflag, size = 0x4, scoped, tag = 'scoped memory for tpu_custom_call.1']
    #allocation7 [shape = 'u8[4096]{0}', space=vmem, size = 0x1000, scoped, tag = 'output window, operand 0, single buffered']
    %7 = vsyncpa [#allocation3], 0
    %8 = vsyncpa [#allocation6], 0
    %9 = vsyncpa [#allocation4], 0
    // Predicated region
    $region2: #{tpu_custom_call.1} parent=1 // pred_check
      _
    $region3: #{tpu_custom_call.1} parent=1 // pred_check_branch
      %11 = sbr.rel (0) target = $region5
    $region4: #{tpu_custom_call.1} parent=1 // pred_region
      %13 = vsyncadd [#allocation3], 0
      %s14 = sshll.u32 %s0, 4
      %s15 = int_to_ptr.hbm [resolvable:$true] %s14
      %s16 = sshll.u32 [#allocation2], 4
      %s17 = int_to_ptr.vmem [resolvable:$true] %s16
      %22 = dma.hbm_to_vmem [thread:$0]  %s15, 256, %s17, [#allocation3], 128, 128, 8
    $region5: #{tpu_custom_call.1} parent=1 // pred_fallthru
      _
    // Predicated region
    $region6: #{tpu_custom_call.1} parent=1 // pred_check
      _
    $region7: #{tpu_custom_call.1} parent=1 // pred_check_branch
      %24 = sbr.rel (0) target = $region9
    $region8: #{tpu_custom_call.1} parent=1 // pred_region
      %26 = vsyncadd [#allocation6], 0
      %s27 = sshll.u32 %s1, 4
      %s28 = int_to_ptr.hbm [resolvable:$true] %s27
      %s29 = sshll.u32 [#allocation5], 4
      %s30 = int_to_ptr.vmem [resolvable:$true] %s29
      %35 = dma.hbm_to_vmem [thread:$0]  %s28, 256, %s30, [#allocation6], 128, 128, 8
    $region9: #{tpu_custom_call.1} parent=1 // pred_fallthru
      _
    // Predicated region
    $region10: #{tpu_custom_call.1} parent=1 // pred_check
      _
    $region11: #{tpu_custom_call.1} parent=1 // pred_check_branch
      %37 = sbr.rel (0) target = $region13
    $region12: #{tpu_custom_call.1} parent=1 // pred_region
      %39 = dma.done [#allocation3], 256
    $region13: #{tpu_custom_call.1} parent=1 // pred_fallthru
      _
    // Predicated region
    $region14: #{tpu_custom_call.1} parent=1 // pred_check
      _
    $region15: #{tpu_custom_call.1} parent=1 // pred_check_branch
      %41 = sbr.rel (0) target = $region17
    $region16: #{tpu_custom_call.1} parent=1 // pred_region
      %43 = dma.done [#allocation6], 256
    $region17: #{tpu_custom_call.1} parent=1 // pred_fallthru
      _
    %v44 = vld [vmem:[#allocation2] sm:$0xff]
    %v45 = vld [vmem:[#allocation2 + $0x8] sm:$0xff]
    %v46 = vld [vmem:[#allocation5] sm:$0xff]
    %v47 = vld [vmem:[#allocation5 + $0x8] sm:$0xff]
    %v48 = vsub.f32 %v46, %v44
    %v49 = vsub.f32 %v47, %v45
    %v50 = vadd.f32 %v48, 0.0
    %v51 = vadd.f32 %v49, 0.0
    %v52 = vmax.f32 %v50, 0.0
    %v53 = vmax.f32 %v51, 0.0
    %v54 = vlaneseq
    %v55 = vshrl.u32 %v54, 7
    %v56 = vadd.s32 %v55, 8
    %v57 = vlaneseq
    %v58 = vand.u32 %v57, 127
    %s59 = smul.u32 0, 16
    %v60 = vstv %s59
    %v61 = vadd.s32 %v60, %v55
    %v62 = vadd.s32 %v60, %v56
    %v63 = vmul.u32 %v61, 128
    %v64 = vmul.u32 %v62, 128
    %v65 = vadd.s32 %v63, %v58
    %v66 = vadd.s32 %v64, %v58
    %vm67 = vcmp.lt.s32.totalorder %v65, 2048
    %vm68 = vcmp.lt.s32.totalorder %v66, 2048
    %v69 = vsel %vm67, %v52, 0.0
    %v70 = vsel %vm68, %v53, 0.0
    %v71 = vadd.f32 %v69, %v70
    %72 = vst [vmem:[#allocation7] sm:$0xff] %v71
    // Predicated region
    $region18: #{tpu_custom_call.1} parent=1 // pred_check
      _
    $region19: #{tpu_custom_call.1} parent=1 // pred_check_branch
      %74 = sbr.rel (0) target = $region21
    $region20: #{tpu_custom_call.1} parent=1 // pred_region
      %76 = vsyncadd [#allocation4], 0
      %s78 = sshll.u32 [#allocation7], 4
      %s79 = int_to_ptr.vmem [resolvable:$true] %s78
      %s80 = sshll.u32 %s2, 4
      %s81 = int_to_ptr.hbm [resolvable:$true] %s80
      %83 = dma.vmem_to_hbm [thread:$0]  %s79, 128, %s81, [#allocation4]
    $region21: #{tpu_custom_call.1} parent=1 // pred_fallthru
      _
    // Predicated region
    $region22: #{tpu_custom_call.1} parent=1 // pred_check
      _
    $region23: #{tpu_custom_call.1} parent=1 // pred_check_branch
      %85 = sbr.rel (0) target = $region25
    $region24: #{tpu_custom_call.1} parent=1 // pred_region
      %87 = dma.done [#allocation4], 128
    $region25: #{tpu_custom_call.1} parent=1 // pred_fallthru
      _
    %88 = vsyncpa [#allocation3], 1
    %89 = vsyncpa [#allocation6], 1
    %90 = vsyncpa [#allocation4], 1

</llo_original>
